<compile_context>
chip_gen: v6e
topology: v6e:2x2x1
jax: 0.10.0
libtpu: 0.0.40
codegen_flags: <defaults>
</compile_context>

<pallas_src>
import functools

import jax
import jax.numpy as jnp
from jax import lax
from jax.experimental import pallas as pl
from jax.experimental.pallas import tpu as pltpu

_EPS = 1e-5
_INV_SQRT2 = 0.7071067811865476
_LANE = 128


def _round_up(c, m=_LANE):
    return ((c + m - 1) // m) * m


def _gelu(y):
    # exact (erf) GELU -- PyTorch nn.GELU() default -- computed in f32
    return 0.5 * y * (1.0 + lax.erf(y * _INV_SQRT2))


def _win(start, size, stride):
    # strided window on a VMEM ref (replacement for im2col of a strided conv)
    return pl.ds(start, size) if stride == 1 else pl.ds(start, size, stride=stride)


def _compiler_params(sem):
    return pltpu.CompilerParams(dimension_semantics=sem,
                                vmem_limit_bytes=32 * 1024 * 1024)


# ----------------------------------------------------------------------------
# stage 1: 1x1 conv + GELU, with per-channel sum / sum-sq accumulators
# ----------------------------------------------------------------------------
def _stage1_kernel(xp_ref, w_ref, b_ref, z_ref, sum_ref, sq_ref):
    n = pl.program_id(0)
    _, H, W, C = z_ref.shape

    @pl.when(n == 0)
    def _():
        sum_ref[...] = jnp.zeros_like(sum_ref)
        sq_ref[...] = jnp.zeros_like(sq_ref)

    xp = xp_ref[0]                                       # (H+2, W+2, Cin) bf16
    x2 = xp[1:H + 1, 1:W + 1, :].reshape(H * W, xp.shape[-1])
    y = jnp.dot(x2, w_ref[...], preferred_element_type=jnp.float32)
    y = _gelu(y + b_ref[...])                            # (H*W, C) f32
    z_ref[0] = y.reshape(H, W, C)
    sum_ref[...] += jnp.sum(y, axis=0, keepdims=True)
    sq_ref[...] += jnp.sum(y * y, axis=0, keepdims=True)


def _stage1(x_pad, w1, b1):
    N, Hp, Wp, Cin = x_pad.shape
    H, W = Hp - 2, Wp - 2
    C = w1.shape[1]
    return pl.pallas_call(
        _stage1_kernel,
        grid=(N,),
        in_specs=[
            pl.BlockSpec((1, Hp, Wp, Cin), lambda n: (n, 0, 0, 0)),
            pl.BlockSpec((Cin, C), lambda n: (0, 0)),
            pl.BlockSpec((1, C), lambda n: (0, 0)),
        ],
        out_specs=(
            pl.BlockSpec((1, H, W, C), lambda n: (n, 0, 0, 0)),
            pl.BlockSpec((1, C), lambda n: (0, 0)),       # resident accumulator
            pl.BlockSpec((1, C), lambda n: (0, 0)),       # resident accumulator
        ),
        out_shape=(
            jax.ShapeDtypeStruct((N, H, W, C), jnp.float32),
            jax.ShapeDtypeStruct((1, C), jnp.float32),
            jax.ShapeDtypeStruct((1, C), jnp.float32),
        ),
        # batch axis carries the BN-stat accumulators -> must be 'arbitrary'
        compiler_params=_compiler_params(("arbitrary",)),
    )(x_pad, w1, b1)


# ----------------------------------------------------------------------------
# stage 2: 3x3 conv (pad 1) + GELU on cat([x, bn1(z1)]); concat + BN folded in
# ----------------------------------------------------------------------------
def _stage2_kernel(xp_ref, z1_ref, s1_ref, t1_ref, wa_ref, wb_ref, b_ref,
                   z_ref, sum_ref, sq_ref, z1p_ref):
    n = pl.program_id(0)
    _, H, W, C = z_ref.shape

    @pl.when(n == 0)
    def _():
        sum_ref[...] = jnp.zeros_like(sum_ref)
        sq_ref[...] = jnp.zeros_like(sq_ref)
        z1p_ref[...] = jnp.zeros_like(z1p_ref)           # zero halo ring once

    # fold previous stage's BN (per-channel scale/shift) and place into the
    # zero-padded VMEM scratch (the ring stays zero = conv zero padding)
    z1p_ref[pl.ds(1, H), pl.ds(1, W), :] = z1_ref[0] * s1_ref[...] + t1_ref[...]

    xp = xp_ref[0]                                       # (H+2, W+2, Cin) bf16
    acc = jnp.zeros((H * W, C), jnp.float32)
    for dy in range(3):                                  # 3x3 conv = 9 shifted matmuls
        for dx in range(3):
            xa = xp[dy:dy + H, dx:dx + W, :].reshape(H * W, -1)
            za = z1p_ref[pl.ds(dy, H), pl.ds(dx, W), :].reshape(H * W, C)
            acc += jnp.dot(xa, wa_ref[dy, dx],
                           preferred_element_type=jnp.float32)
            acc += jnp.dot(za.astype(jnp.bfloat16), wb_ref[dy, dx],
                           preferred_element_type=jnp.float32)
    y = _gelu(acc + b_ref[...])
    z_ref[0] = y.reshape(H, W, C)
    sum_ref[...] += jnp.sum(y, axis=0, keepdims=True)
    sq_ref[...] += jnp.sum(y * y, axis=0, keepdims=True)


def _stage2(x_pad, z1, sc1, sh1, w2a, w2b, b2):
    N, Hp, Wp, Cin = x_pad.shape
    H, W = Hp - 2, Wp - 2
    C = w2b.shape[-1]
    return pl.pallas_call(
        _stage2_kernel,
        grid=(N,),
        in_specs=[
            pl.BlockSpec((1, Hp, Wp, Cin), lambda n: (n, 0, 0, 0)),
            pl.BlockSpec((1, H, W, C), lambda n: (n, 0, 0, 0)),
            pl.BlockSpec((1, C), lambda n: (0, 0)),
            pl.BlockSpec((1, C), lambda n: (0, 0)),
            pl.BlockSpec((3, 3, Cin, C), lambda n: (0, 0, 0, 0)),
            pl.BlockSpec((3, 3, C, C), lambda n: (0, 0, 0, 0)),
            pl.BlockSpec((1, C), lambda n: (0, 0)),
        ],
        out_specs=(
            pl.BlockSpec((1, H, W, C), lambda n: (n, 0, 0, 0)),
            pl.BlockSpec((1, C), lambda n: (0, 0)),
            pl.BlockSpec((1, C), lambda n: (0, 0)),
        ),
        out_shape=(
            jax.ShapeDtypeStruct((N, H, W, C), jnp.float32),
            jax.ShapeDtypeStruct((1, C), jnp.float32),
            jax.ShapeDtypeStruct((1, C), jnp.float32),
        ),
        scratch_shapes=[pltpu.VMEM((Hp, Wp, C), jnp.float32)],
        compiler_params=_compiler_params(("arbitrary",)),
    )(x_pad, z1, sc1, sh1, w2a, w2b, b2)


# ----------------------------------------------------------------------------
# stage 3: strided 3x3 conv (pad 1) + GELU on cat([bn1(z1), bn2(z2)])
# ----------------------------------------------------------------------------
def _stage3_kernel(z1_ref, z2_ref, s1_ref, t1_ref, s2_ref, t2_ref,
                   wa_ref, wb_ref, b_ref, z_ref, sum_ref, sq_ref,
                   z1p_ref, z2p_ref, *, stride):
    n = pl.program_id(0)
    _, Ho, Wo, Co = z_ref.shape
    _, H, W, _ = z1_ref.shape

    @pl.when(n == 0)
    def _():
        sum_ref[...] = jnp.zeros_like(sum_ref)
        sq_ref[...] = jnp.zeros_like(sq_ref)
        z1p_ref[...] = jnp.zeros_like(z1p_ref)
        z2p_ref[...] = jnp.zeros_like(z2p_ref)

    z1p_ref[pl.ds(1, H), pl.ds(1, W), :] = z1_ref[0] * s1_ref[...] + t1_ref[...]
    z2p_ref[pl.ds(1, H), pl.ds(1, W), :] = z2_ref[0] * s2_ref[...] + t2_ref[...]

    acc = jnp.zeros((Ho * Wo, Co), jnp.float32)
    for dy in range(3):
        for dx in range(3):
            a = z1p_ref[_win(dy, Ho, stride), _win(dx, Wo, stride), :]
            b = z2p_ref[_win(dy, Ho, stride), _win(dx, Wo, stride), :]
            acc += jnp.dot(a.reshape(Ho * Wo, -1).astype(jnp.bfloat16),
                           wa_ref[dy, dx], preferred_element_type=jnp.float32)
            acc += jnp.dot(b.reshape(Ho * Wo, -1).astype(jnp.bfloat16),
                           wb_ref[dy, dx], preferred_element_type=jnp.float32)
    y = _gelu(acc + b_ref[...])
    z_ref[0] = y.reshape(Ho, Wo, Co)
    sum_ref[...] += jnp.sum(y, axis=0, keepdims=True)
    sq_ref[...] += jnp.sum(y * y, axis=0, keepdims=True)


def _stage3(z1, z2, sc1, sh1, sc2, sh2, w3a, w3b, b3, stride):
    N, H, W, C = z1.shape
    Co = w3a.shape[-1]
    Ho = (H + 2 - 3) // stride + 1
    Wo = (W + 2 - 3) // stride + 1
    kern = functools.partial(_stage3_kernel, stride=stride)
    return pl.pallas_call(
        kern,
        grid=(N,),
        in_specs=[
            pl.BlockSpec((1, H, W, C), lambda n: (n, 0, 0, 0)),
            pl.BlockSpec((1, H, W, C), lambda n: (n, 0, 0, 0)),
            pl.BlockSpec((1, C), lambda n: (0, 0)),
            pl.BlockSpec((1, C), lambda n: (0, 0)),
            pl.BlockSpec((1, C), lambda n: (0, 0)),
            pl.BlockSpec((1, C), lambda n: (0, 0)),
            pl.BlockSpec((3, 3, C, Co), lambda n: (0, 0, 0, 0)),
            pl.BlockSpec((3, 3, C, Co), lambda n: (0, 0, 0, 0)),
            pl.BlockSpec((1, Co), lambda n: (0, 0)),
        ],
        out_specs=(
            pl.BlockSpec((1, Ho, Wo, Co), lambda n: (n, 0, 0, 0)),
            pl.BlockSpec((1, Co), lambda n: (0, 0)),
            pl.BlockSpec((1, Co), lambda n: (0, 0)),
        ),
        out_shape=(
            jax.ShapeDtypeStruct((N, Ho, Wo, Co), jnp.float32),
            jax.ShapeDtypeStruct((1, Co), jnp.float32),
            jax.ShapeDtypeStruct((1, Co), jnp.float32),
        ),
        scratch_shapes=[pltpu.VMEM((H + 2, W + 2, C), jnp.float32),
                        pltpu.VMEM((H + 2, W + 2, C), jnp.float32)],
        compiler_params=_compiler_params(("arbitrary",)),
    )(z1, z2, sc1, sh1, sc2, sh2, w3a, w3b, b3)


# ----------------------------------------------------------------------------
# final BN application for the last stage's output (lane-dense elementwise)
# ----------------------------------------------------------------------------
def _bn_apply_kernel(z_ref, s_ref, t_ref, o_ref):
    o_ref[...] = z_ref[...] * s_ref[...] + t_ref[...]


def _bn_apply(z, scale, shift):
    N, Ho, Wo, C = z.shape
    return pl.pallas_call(
        _bn_apply_kernel,
        grid=(N,),
        in_specs=[
            pl.BlockSpec((1, Ho, Wo, C), lambda n: (n, 0, 0, 0)),
            pl.BlockSpec((1, C), lambda n: (0, 0)),
            pl.BlockSpec((1, C), lambda n: (0, 0)),
        ],
        out_specs=pl.BlockSpec((1, Ho, Wo, C), lambda n: (n, 0, 0, 0)),
        out_shape=jax.ShapeDtypeStruct((N, Ho, Wo, C), jnp.float32),
        compiler_params=_compiler_params(("parallel",)),   # megacore-friendly
    )(z, scale, shift)


# ----------------------------------------------------------------------------
# plain-JAX glue: stats -> per-channel scale/shift, parameter construction
# ----------------------------------------------------------------------------
def _scale_shift(s, q, count, gamma, beta):
    # PyTorch training-mode BatchNorm2d: batch mean / biased variance, eps=1e-5
    mean = s / count
    var = jnp.maximum(q / count - mean * mean, 0.0)
    scale = gamma * lax.rsqrt(var + _EPS)
    shift = beta - mean * scale
    return scale, shift


def _pad_last(a, to):
    return jnp.pad(a, [(0, 0)] * (a.ndim - 1) + [(0, to - a.shape[-1])])


def _pad_axis(a, axis, to):
    pads = [(0, 0)] * a.ndim
    pads[axis] = (0, to - a.shape[axis])
    return jnp.pad(a, pads)


def init_params(key, in_ch, out_ch):
    """Deterministic synthetic weights in the kernels' layout:
    conv weights as (kh, kw, Cin, Cout) slices, split by concat branch,
    channel axes zero-padded up to a multiple of 128 (lane-dense)."""
    hidden = max(in_ch, out_ch)
    Cp = _round_up(hidden)
    Cop = _round_up(out_ch)
    k = jax.random.split(key, 6)
    bf = jnp.bfloat16

    def t(w):   # PyTorch (Cout, Cin, kh, kw) -> (kh, kw, Cin, Cout)
        return jnp.transpose(w, (2, 3, 1, 0))

    w1 = jax.random.normal(k[0], (hidden, in_ch, 1, 1), jnp.float32) * 0.1
    b1 = jax.random.normal(k[1], (1, hidden), jnp.float32) * 0.05
    w2 = jax.random.normal(k[2], (hidden, hidden + in_ch, 3, 3), jnp.float32) * 0.1
    b2 = jax.random.normal(k[3], (1, hidden), jnp.float32) * 0.05
    w3 = jax.random.normal(k[4], (out_ch, 2 * hidden, 3, 3), jnp.float32) * 0.1
    b3 = jax.random.normal(k[5], (1, out_ch), jnp.float32) * 0.05

    return {
        "w1": _pad_last(t(w1)[0, 0], Cp).astype(bf),                          # (in_ch, Cp)
        "b1": _pad_last(b1, Cp),
        "g1": _pad_last(jnp.ones((1, hidden), jnp.float32), Cp),
        "be1": jnp.zeros((1, Cp), jnp.float32),
        # hidden conv input = cat([x, bn1]) -> split weight into x / bn1 branches
        "w2a": _pad_last(t(w2[:, :in_ch]), Cp).astype(bf),                    # (3,3,in_ch,Cp)
        "w2b": _pad_axis(_pad_last(t(w2[:, in_ch:]), Cp), 2, Cp).astype(bf),  # (3,3,Cp,Cp)
        "b2": _pad_last(b2, Cp),
        "g2": _pad_last(jnp.ones((1, hidden), jnp.float32), Cp),
        "be2": jnp.zeros((1, Cp), jnp.float32),
        # conv_out input = cat([bn1, bn2])
        "w3a": _pad_axis(_pad_last(t(w3[:, :hidden]), Cop), 2, Cp).astype(bf),  # (3,3,Cp,Cop)
        "w3b": _pad_axis(_pad_last(t(w3[:, hidden:]), Cop), 2, Cp).astype(bf),  # (3,3,Cp,Cop)
        "b3": _pad_last(b3, Cop),
        "g3": _pad_last(jnp.ones((1, out_ch), jnp.float32), Cop),
        "be3": jnp.zeros((1, Cop), jnp.float32),
        "out_ch": out_ch,
    }


def conv_res_block(x_nchw, params, stride=2):
    # NCHW (PyTorch) -> NHWC (kernel layout); bf16 for the MXU operand stream.
    x = jnp.transpose(x_nchw, (0, 2, 3, 1))
    N, H, W, _ = x.shape
    x_pad = jnp.pad(x, ((0, 0), (1, 1), (1, 1), (0, 0))).astype(jnp.bfloat16)
    cnt = float(N * H * W)

    # stage 1: 1x1 conv + GELU (batch BN stats accumulated in-kernel)
    z1, s1, q1 = _stage1(x_pad, params["w1"], params["b1"])
    sc1, sh1 = _scale_shift(s1, q1, cnt, params["g1"], params["be1"])

    # stage 2: 3x3 conv (pad 1) + GELU on cat([x, bn1(z1)]) -- concat & BN in VMEM
    z2, s2, q2 = _stage2(x_pad, z1, sc1, sh1,
                         params["w2a"], params["w2b"], params["b2"])
    sc2, sh2 = _scale_shift(s2, q2, cnt, params["g2"], params["be2"])

    # stage 3: strided 3x3 conv (pad 1) + GELU on cat([bn1(z1), bn2(z2)])
    z3, s3, q3 = _stage3(z1, z2, sc1, sh1, sc2, sh2,
                         params["w3a"], params["w3b"], params["b3"], stride)
    No, Ho, Wo, _ = z3.shape
    sc3, sh3 = _scale_shift(s3, q3, float(No * Ho * Wo),
                            params["g3"], params["be3"])
    out = _bn_apply(z3, sc3, sh3)

    # drop lane padding, NHWC -> NCHW
    # TODO(synk): BatchNorm running-stat buffer updates (a training side effect,
    # not part of the forward output) are not modeled.
    return jnp.transpose(out[..., :params["out_ch"]], (0, 3, 1, 2))


if __name__ == "__main__":
    in_channels, out_channels, stride = 4, 8, 2
    key = jax.random.PRNGKey(0)
    kx, kp = jax.random.split(key)
    x = jax.random.normal(kx, (2, in_channels, 16, 16), jnp.float32)  # NCHW
    params = init_params(kp, in_channels, out_channels)

    out = conv_res_block(x, params, stride=stride)
    out = jax.block_until_ready(out)
    assert out.shape == (2, out_channels, 8, 8), out.shape
    print("KERNEL_OK")
</pallas_src>

<mosaic_0001>
module attributes {stable_mosaic.version = 11 : i64} {
  func.func @_stage1_kernel(%arg0: i32, %arg1: memref<1x18x18x4xbf16, #tpu.memory_space<vmem>>, %arg2: memref<4x128xbf16, #tpu.memory_space<vmem>>, %arg3: memref<1x128xf32, #tpu.memory_space<vmem>>, %arg4: memref<1x16x16x128xf32, #tpu.memory_space<vmem>>, %arg5: memref<1x128xf32, #tpu.memory_space<vmem>>, %arg6: memref<1x128xf32, #tpu.memory_space<vmem>>) attributes {dimension_semantics = [#tpu.dimension_semantics<arbitrary>], iteration_bounds = array<i64: 2>, scalar_prefetch = 0 : i64, scratch_operands = 0 : i64, tpu.core_type = #tpu.core_type<tc>, window_params = [{transform_indices = @transform_0, window_bounds = array<i64: 1, 18, 18, 4>}, {pipeline_mode = #tpu.pipeline_mode<synchronous>, transform_indices = @transform_1, window_bounds = array<i64: 4, 128>}, {pipeline_mode = #tpu.pipeline_mode<synchronous>, transform_indices = @transform_2, window_bounds = array<i64: 1, 128>}, {transform_indices = @transform_3, window_bounds = array<i64: 1, 16, 16, 128>}, {pipeline_mode = #tpu.pipeline_mode<synchronous>, transform_indices = @transform_4, window_bounds = array<i64: 1, 128>}, {pipeline_mode = #tpu.pipeline_mode<synchronous>, transform_indices = @transform_5, window_bounds = array<i64: 1, 128>}]} {
    %c0_i32 = arith.constant 0 : i32
    %0 = arith.cmpi eq, %arg0, %c0_i32 : i32
    %1 = arith.extui %0 : i1 to i32
    %c0_i32_0 = arith.constant 0 : i32
    %2 = arith.cmpi ne, %1, %c0_i32_0 : i32
    scf.if %2 {
      %cst_25 = arith.constant 0.000000e+00 : f32
      %35 = vector.broadcast %cst_25 : f32 to vector<1x128xf32>
      %c0_26 = arith.constant 0 : index
      %c0_27 = arith.constant 0 : index
      %36 = vector.load %arg5[%c0_26, %c0_27] : memref<1x128xf32, #tpu.memory_space<vmem>>, vector<1x128xf32>
      tpu.vector_store %arg5[%c0_26, %c0_27], %35 {strides = array<i32>} : memref<1x128xf32, #tpu.memory_space<vmem>>, vector<1x128xf32>,
      %cst_28 = arith.constant 0.000000e+00 : f32
      %37 = vector.broadcast %cst_28 : f32 to vector<1x128xf32>
      %c0_29 = arith.constant 0 : index
      %c0_30 = arith.constant 0 : index
      %38 = vector.load %arg6[%c0_29, %c0_30] : memref<1x128xf32, #tpu.memory_space<vmem>>, vector<1x128xf32>
      tpu.vector_store %arg6[%c0_29, %c0_30], %37 {strides = array<i32>} : memref<1x128xf32, #tpu.memory_space<vmem>>, vector<1x128xf32>,
    } else {
    }
    %c0 = arith.constant 0 : index
    %c0_1 = arith.constant 0 : index
    %c0_2 = arith.constant 0 : index
    %c0_3 = arith.constant 0 : index
    %3 = vector.load %arg1[%c0, %c0_1, %c0_2, %c0_3] : memref<1x18x18x4xbf16, #tpu.memory_space<vmem>>, vector<1x18x18x4xbf16>
    %4 = vector.shape_cast %3 : vector<1x18x18x4xbf16> to vector<18x18x4xbf16>
    %5 = vector.extract_strided_slice %4 {offsets = [1, 1, 0], sizes = [16, 16, 4], strides = [1, 1, 1]} : vector<18x18x4xbf16> to vector<16x16x4xbf16>
    %6 = vector.shape_cast %5 : vector<16x16x4xbf16> to vector<256x4xbf16>
    %c0_4 = arith.constant 0 : index
    %c0_5 = arith.constant 0 : index
    %7 = vector.load %arg2[%c0_4, %c0_5] : memref<4x128xbf16, #tpu.memory_space<vmem>>, vector<4x128xbf16>
    %cst = arith.constant dense<0.000000e+00> : vector<256x128xf32>
    %8 = tpu.matmul %6, %7, %cst {dimension_numbers = #tpu.dot_dimension_numbers<[1], [0], [0], [1], [0, 0, 1, 1], [], []>} : vector<256x4xbf16>, vector<4x128xbf16>, vector<256x128xf32> -> vector<256x128xf32>
    %c0_6 = arith.constant 0 : index
    %c0_7 = arith.constant 0 : index
    %9 = vector.load %arg3[%c0_6, %c0_7] : memref<1x128xf32, #tpu.memory_space<vmem>>, vector<1x128xf32>
    %10 = vector.broadcast %9 : vector<1x128xf32> to vector<256x128xf32>
    %11 = arith.addf %8, %10 : vector<256x128xf32>
    %cst_8 = arith.constant 5.000000e-01 : f32
    %12 = vector.broadcast %cst_8 : f32 to vector<256x128xf32>
    %13 = arith.mulf %12, %11 : vector<256x128xf32>
    %cst_9 = arith.constant 0.707106769 : f32
    %14 = vector.broadcast %cst_9 : f32 to vector<256x128xf32>
    %15 = arith.mulf %11, %14 : vector<256x128xf32>
    %16 = math.erf %15 : vector<256x128xf32>
    %cst_10 = arith.constant 1.000000e+00 : f32
    %17 = vector.broadcast %cst_10 : f32 to vector<256x128xf32>
    %18 = arith.addf %17, %16 : vector<256x128xf32>
    %19 = arith.mulf %13, %18 : vector<256x128xf32>
    %20 = vector.shape_cast %19 : vector<256x128xf32> to vector<16x16x128xf32>
    %c0_11 = arith.constant 0 : index
    %c0_12 = arith.constant 0 : index
    %c0_13 = arith.constant 0 : index
    %c0_14 = arith.constant 0 : index
    %21 = vector.load %arg4[%c0_11, %c0_12, %c0_13, %c0_14] : memref<1x16x16x128xf32, #tpu.memory_space<vmem>>, vector<1x16x16x128xf32>
    %22 = vector.shape_cast %21 : vector<1x16x16x128xf32> to vector<16x16x128xf32>
    %23 = vector.shape_cast %20 : vector<16x16x128xf32> to vector<1x16x16x128xf32>
    tpu.vector_store %arg4[%c0_11, %c0_12, %c0_13, %c0_14], %23 {strides = array<i32>} : memref<1x16x16x128xf32, #tpu.memory_space<vmem>>, vector<1x16x16x128xf32>,
    %c0_15 = arith.constant 0 : index
    %c0_16 = arith.constant 0 : index
    %24 = vector.load %arg5[%c0_15, %c0_16] : memref<1x128xf32, #tpu.memory_space<vmem>>, vector<1x128xf32>
    %cst_17 = arith.constant dense<0.000000e+00> : vector<128xf32>
    %25 = vector.multi_reduction <add>, %19, %cst_17 [0] : vector<256x128xf32> to vector<128xf32>
    %26 = vector.shape_cast %25 : vector<128xf32> to vector<1x128xf32>
    %27 = arith.addf %24, %26 : vector<1x128xf32>
    %c0_18 = arith.constant 0 : index
    %c0_19 = arith.constant 0 : index
    %28 = vector.load %arg5[%c0_18, %c0_19] : memref<1x128xf32, #tpu.memory_space<vmem>>, vector<1x128xf32>
    tpu.vector_store %arg5[%c0_18, %c0_19], %27 {strides = array<i32>} : memref<1x128xf32, #tpu.memory_space<vmem>>, vector<1x128xf32>,
    %c0_20 = arith.constant 0 : index
    %c0_21 = arith.constant 0 : index
    %29 = vector.load %arg6[%c0_20, %c0_21] : memref<1x128xf32, #tpu.memory_space<vmem>>, vector<1x128xf32>
    %30 = arith.mulf %19, %19 : vector<256x128xf32>
    %cst_22 = arith.constant dense<0.000000e+00> : vector<128xf32>
    %31 = vector.multi_reduction <add>, %30, %cst_22 [0] : vector<256x128xf32> to vector<128xf32>
    %32 = vector.shape_cast %31 : vector<128xf32> to vector<1x128xf32>
    %33 = arith.addf %29, %32 : vector<1x128xf32>
    %c0_23 = arith.constant 0 : index
    %c0_24 = arith.constant 0 : index
    %34 = vector.load %arg6[%c0_23, %c0_24] : memref<1x128xf32, #tpu.memory_space<vmem>>, vector<1x128xf32>
    tpu.vector_store %arg6[%c0_23, %c0_24], %33 {strides = array<i32>} : memref<1x128xf32, #tpu.memory_space<vmem>>, vector<1x128xf32>,
    return
  }
  func.func @transform_0(%arg0: i32) -> (i32, i32, i32, i32) {
    %c0_i32 = arith.constant 0 : i32
    %c0_i32_0 = arith.constant 0 : i32
    %c0_i32_1 = arith.constant 0 : i32
    %c0_i32_2 = arith.constant 0 : i32
    return %arg0, %c0_i32, %c0_i32_0, %c0_i32_1 : i32, i32, i32, i32
  }
  func.func @transform_1(%arg0: i32) -> (i32, i32) {
    %c0_i32 = arith.constant 0 : i32
    %c0_i32_0 = arith.constant 0 : i32
    %c0_i32_1 = arith.constant 0 : i32
    return %c0_i32, %c0_i32_0 : i32, i32
  }
  func.func @transform_2(%arg0: i32) -> (i32, i32) {
    %c0_i32 = arith.constant 0 : i32
    %c0_i32_0 = arith.constant 0 : i32
    %c0_i32_1 = arith.constant 0 : i32
    return %c0_i32, %c0_i32_0 : i32, i32
  }
  func.func @transform_3(%arg0: i32) -> (i32, i32, i32, i32) {
    %c0_i32 = arith.constant 0 : i32
    %c0_i32_0 = arith.constant 0 : i32
    %c0_i32_1 = arith.constant 0 : i32
    %c0_i32_2 = arith.constant 0 : i32
    return %arg0, %c0_i32, %c0_i32_0, %c0_i32_1 : i32, i32, i32, i32
  }
  func.func @transform_4(%arg0: i32) -> (i32, i32) {
    %c0_i32 = arith.constant 0 : i32
    %c0_i32_0 = arith.constant 0 : i32
    %c0_i32_1 = arith.constant 0 : i32
    return %c0_i32, %c0_i32_0 : i32, i32
  }
  func.func @transform_5(%arg0: i32) -> (i32, i32) {
    %c0_i32 = arith.constant 0 : i32
    %c0_i32_0 = arith.constant 0 : i32
    %c0_i32_1 = arith.constant 0 : i32
    return %c0_i32, %c0_i32_0 : i32, i32
  }
}

</mosaic_0001>

<llo_original>
// kernel: tpu_custom_call.1
$region0: #{tpu_custom_call.1}
  #allocation0 [shape = 'u32[]', space=smem, size = 0x4, offset = 0x4, fixed_abs, tag = 'smem constant byte address 0x4 - core index']
  #allocation1 [shape = 'u32[144,128]{1,0:T(1,128)}', space=vmem, size = 0x12000, scoped, tag = 'internal scratch']
  %s0 = inlined_call_operand.vmem [shape: bf16[2,18,18,4], index: 0, kind: input, shape index: {}]
  %s1 = inlined_call_operand.vmem [shape: bf16[4,128], index: 1, kind: input, shape index: {}]
  %s2 = inlined_call_operand.vmem [shape: f32[1,128], index: 2, kind: input, shape index: {}]
  %s3 = inlined_call_operand.hbm [shape: f32[2,16,16,128], index: 3, kind: output, shape index: {0}]
  %s4 = inlined_call_operand.hbm [shape: f32[1,128], index: 4, kind: output, shape index: {1}]
  %s5 = inlined_call_operand.hbm [shape: f32[1,128], index: 5, kind: output, shape index: {2}]
  %6 = xla_tuple %s3, %s4, %s5
  %s7 = sld [smem:[#allocation0]]
  $region65: #{tpu_custom_call.1} parent=0
    _
  %s9 = ssub.s32 1, %s7
  %s10 = scalar_select 0, %s9, %s7
  $region1: #{tpu_custom_call.1} parent=0
    #allocation2 [shape = 'u8[262144]{0}', space=vmem, size = 0x40000, scoped, tag = 'output window, operand 0']
    #allocation3 [shape = 's32[2]{0}', space=sflag, size = 0x8, scoped, tag = 'scoped memory for tpu_custom_call.1']
    #allocation4 [shape = 'u8[512]{0}', space=vmem, size = 0x400, scoped, tag = 'output window, operand 1, single buffered']
    #allocation5 [shape = 's32[1]{0}', space=sflag, size = 0x4, scoped, tag = 'scoped memory for tpu_custom_call.1']
    #allocation6 [shape = 'u8[512]{0}', space=vmem, size = 0x400, scoped, tag = 'output window, operand 2, single buffered']
    %11 = vsyncpa [#allocation3], 0
    %s12 = scalar_lea.sflag [#allocation3], 1
    %13 = vsyncpa %s12, 0
    %14 = vsyncpa [#allocation5], 0
    loop: start=0, step=1, limit=4
    $region2: #{tpu_custom_call.1} parent=1 // loop_pre_header
      _
    $region3: #{tpu_custom_call.1} parent=1 // loop_header
      %s16 = sphi 0, %s20
      %p17 = scmp.ge.s32.totalorder %s16, 4
      %s26 = sphi 0, %s28
      %s29 = sphi 0, %s26
      %s30 = sphi 0, %s29
      %s46 = sphi 0, %s30
      %s50 = sphi 0, %s50
      %s52 = sphi 0, %s50
      %s53 = sphi 0, %s52
      %s67 = sphi 0, %s53
      %s71 = sphi 0, %s71
      %s73 = sphi 0, %s71
      %s74 = sphi 0, %s73
      %s88 = sphi 0, %s74
      %s94 = sphi 0, %s96
      %s97 = sphi 0, %s94
      %s98 = sphi 0, %s97
      %s114 = sphi 0, %s98
      %s118 = sphi 0, %s118
      %s120 = sphi 0, %s118
      %s121 = sphi 0, %s120
      %s135 = sphi 0, %s121
      %s139 = sphi 0, %s139
      %s141 = sphi 0, %s139
      %s142 = sphi 0, %s141
      %s156 = sphi 0, %s142
    $region4: #{tpu_custom_call.1} parent=1 // loop_header_branch
      %19 = sbr.rel (%p17) target = $region8
    $region5: #{tpu_custom_call.1} parent=1 // loop_body
      %s21 = ssub.s32 %s16, 1
      %s22 = ssub.s32 %s16, 2
      %s23 = sadd.s32 %s16, 1
      %s24 = ssub.s32 %s16, %s23
      %p25 = scmp.eq.s32.totalorder %s24, 0
      %s27 = sadd.s32 %s26, 1
      %s28 = scalar_select %p25, %s26, %s27
      %p31 = pneg %p25
      %p32 = scmp.eq.s32.totalorder %s16, 1
      %p33 = por %p31, %p32
      %p34 = scmp.ne.s32.totalorder %s26, %s29
      %p35 = scmp.eq.s32.totalorder %s16, 0
      %p36 = por %p34, %p35
      %p37 = scmp.ne.s32.totalorder %s26, %s29
      %p38 = scmp.eq.s32.totalorder %s21, 1
      %p39 = por %p37, %p38
      %p40 = scmp.ne.s32.totalorder %s29, %s30
      %p41 = scmp.eq.s32.totalorder %s21, 0
      %p42 = por %p40, %p41
      %p43 = scmp.ne.s32.totalorder %s29, %s30
      %p44 = scmp.eq.s32.totalorder %s22, 1
      %p45 = por %p43, %p44
      %p47 = scmp.ne.s32.totalorder %s30, %s46
      %p48 = scmp.eq.s32.totalorder %s22, 0
      %p49 = por %p47, %p48
      %s51 = sadd.s32 %s50, 1
      %p54 = scmp.eq.s32.totalorder %s16, 1
      %p55 = scmp.ne.s32.totalorder %s50, %s52
      %p56 = scmp.eq.s32.totalorder %s16, 0
      %p57 = por %p55, %p56
      %p58 = scmp.ne.s32.totalorder %s50, %s52
      %p59 = scmp.eq.s32.totalorder %s21, 1
      %p60 = por %p58, %p59
      %p61 = scmp.ne.s32.totalorder %s52, %s53
      %p62 = scmp.eq.s32.totalorder %s21, 0
      %p63 = por %p61, %p62
      %p64 = scmp.ne.s32.totalorder %s52, %s53
      %p65 = scmp.eq.s32.totalorder %s22, 1
      %p66 = por %p64, %p65
      %p68 = scmp.ne.s32.totalorder %s53, %s67
      %p69 = scmp.eq.s32.totalorder %s22, 0
      %p70 = por %p68, %p69
      %s72 = sadd.s32 %s71, 1
      %p75 = scmp.eq.s32.totalorder %s16, 1
      %p76 = scmp.ne.s32.totalorder %s71, %s73
      %p77 = scmp.eq.s32.totalorder %s16, 0
      %p78 = por %p76, %p77
      %p79 = scmp.ne.s32.totalorder %s71, %s73
      %p80 = scmp.eq.s32.totalorder %s21, 1
      %p81 = por %p79, %p80
      %p82 = scmp.ne.s32.totalorder %s73, %s74
      %p83 = scmp.eq.s32.totalorder %s21, 0
      %p84 = por %p82, %p83
      %p85 = scmp.ne.s32.totalorder %s73, %s74
      %p86 = scmp.eq.s32.totalorder %s22, 1
      %p87 = por %p85, %p86
      %p89 = scmp.ne.s32.totalorder %s74, %s88
      %p90 = scmp.eq.s32.totalorder %s22, 0
      %p91 = por %p89, %p90
      %s92 = ssub.s32 %s16, %s23
      %p93 = scmp.eq.s32.totalorder %s92, 0
      %s95 = sadd.s32 %s94, 1
      %s96 = scalar_select %p93, %s94, %s95
      %p99 = pneg %p93
      %p100 = scmp.eq.s32.totalorder %s16, 1
      %p101 = por %p99, %p100
      %p102 = scmp.ne.s32.totalorder %s94, %s97
      %p103 = scmp.eq.s32.totalorder %s16, 0
      %p104 = por %p102, %p103
      %p105 = scmp.ne.s32.totalorder %s94, %s97
      %p106 = scmp.eq.s32.totalorder %s21, 1
      %p107 = por %p105, %p106
      %p108 = scmp.ne.s32.totalorder %s97, %s98
      %p109 = scmp.eq.s32.totalorder %s21, 0
      %p110 = por %p108, %p109
      %p111 = scmp.ne.s32.totalorder %s97, %s98
      %p112 = scmp.eq.s32.totalorder %s22, 1
      %p113 = por %p111, %p112
      %p115 = scmp.ne.s32.totalorder %s98, %s114
      %p116 = scmp.eq.s32.totalorder %s22, 0
      %p117 = por %p115, %p116
      %s119 = sadd.s32 %s118, 1
      %p122 = scmp.eq.s32.totalorder %s16, 1
      %p123 = scmp.ne.s32.totalorder %s118, %s120
      %p124 = scmp.eq.s32.totalorder %s16, 0
      %p125 = por %p123, %p124
      %p126 = scmp.ne.s32.totalorder %s118, %s120
      %p127 = scmp.eq.s32.totalorder %s21, 1
      %p128 = por %p126, %p127
      %p129 = scmp.ne.s32.totalorder %s120, %s121
      %p130 = scmp.eq.s32.totalorder %s21, 0
      %p131 = por %p129, %p130
      %p132 = scmp.ne.s32.totalorder %s120, %s121
      %p133 = scmp.eq.s32.totalorder %s22, 1
      %p134 = por %p132, %p133
      %p136 = scmp.ne.s32.totalorder %s121, %s135
      %p137 = scmp.eq.s32.totalorder %s22, 0
      %p138 = por %p136, %p137
      %s140 = sadd.s32 %s139, 1
      %p143 = scmp.eq.s32.totalorder %s16, 1
      %p144 = scmp.ne.s32.totalorder %s139, %s141
      %p145 = scmp.eq.s32.totalorder %s16, 0
      %p146 = por %p144, %p145
      %p147 = scmp.ne.s32.totalorder %s139, %s141
      %p148 = scmp.eq.s32.totalorder %s21, 1
      %p149 = por %p147, %p148
      %p150 = scmp.ne.s32.totalorder %s141, %s142
      %p151 = scmp.eq.s32.totalorder %s21, 0
      %p152 = por %p150, %p151
      %p153 = scmp.ne.s32.totalorder %s141, %s142
      %p154 = scmp.eq.s32.totalorder %s22, 1
      %p155 = por %p153, %p154
      %p157 = scmp.ne.s32.totalorder %s142, %s156
      %p158 = scmp.eq.s32.totalorder %s22, 0
      %p159 = por %p157, %p158
      %p160 = scmp.le.s32.totalorder 1, %s16
      %p161 = scmp.lt.s32.totalorder %s16, 3
      %p162 = pnand %p160, %p161
      %p163 = pneg %p162
      // Predicated region
      $region9: #{tpu_custom_call.1} parent=5 // pred_check
        _
      $region10: #{tpu_custom_call.1} parent=5 // pred_check_branch
        %165 = sbr.rel (%p162) target = $region12
      $region11: #{tpu_custom_call.1} parent=5 // pred_region
        %s166 = ssub.s32 %s16, 1
        // Predicated region
        $region13: #{tpu_custom_call.1} parent=11 // pred_check
          %p167 = pneg %p63
        $region14: #{tpu_custom_call.1} parent=11 // pred_check_branch
          %169 = sbr.rel (%p167) target = $region16
        $region15: #{tpu_custom_call.1} parent=11 // pred_region
          _
        $region16: #{tpu_custom_call.1} parent=11 // pred_fallthru
          _
        // Predicated region
        $region17: #{tpu_custom_call.1} parent=11 // pred_check
          %p170 = pneg %p84
        $region18: #{tpu_custom_call.1} parent=11 // pred_check_branch
          %172 = sbr.rel (%p170) target = $region20
        $region19: #{tpu_custom_call.1} parent=11 // pred_region
          _
        $region20: #{tpu_custom_call.1} parent=11 // pred_fallthru
          _
      $region12: #{tpu_custom_call.1} parent=5 // pred_fallthru
        _
      %p173 = scmp.lt.s32.totalorder %s16, 2
      // Predicated region
      $region21: #{tpu_custom_call.1} parent=5 // pred_check
        %p174 = pneg %p173
      $region22: #{tpu_custom_call.1} parent=5 // pred_check_branch
        %176 = sbr.rel (%p174) target = $region24
      $region23: #{tpu_custom_call.1} parent=5 // pred_region
        // Predicated region
        $region25: #{tpu_custom_call.1} parent=23 // pred_check
          %p177 = pneg %p36
        $region26: #{tpu_custom_call.1} parent=23 // pred_check_branch
          %179 = sbr.rel (%p177) target = $region28
        $region27: #{tpu_custom_call.1} parent=23 // pred_region
          %p180 = scmp.lt.s32.totalorder %s16, 1
          %s181 = scalar_select %p180, %s16, 1
          %s182 = smul.addr %s181, 54
          %s183 = smul.addr %s182, 4
          %s184 = scalar_lea.vmem %s0, %s183
        $region28: #{tpu_custom_call.1} parent=23 // pred_fallthru
          _
      $region24: #{tpu_custom_call.1} parent=5 // pred_fallthru
        _
      %p185 = scmp.le.s32.totalorder 1, %s16
      %p186 = scmp.lt.s32.totalorder %s16, 3
      %p187 = pnand %p185, %p186
      %p188 = pneg %p187
      // Predicated region
      $region29: #{tpu_custom_call.1} parent=5 // pred_check
        _
      $region30: #{tpu_custom_call.1} parent=5 // pred_check_branch
        %190 = sbr.rel (%p187) target = $region32
      $region31: #{tpu_custom_call.1} parent=5 // pred_region
        %s191 = ssub.s32 %s16, 1
        %p192 = scmp.lt.s32.totalorder %s21, 1
        %s193 = scalar_select %p192, %s21, 1
        %s194 = smul.addr %s193, 54
        %s195 = smul.addr %s194, 4
        %s196 = scalar_lea.vmem %s0, %s195
        %p197 = pneg %p42
        %p198 = pneg %p39
        %p199 = pneg %p63
        %p200 = pneg %p60
        %p201 = pneg %p84
        %p202 = pneg %p81
        %p203 = pneg %p110
        %p204 = pneg %p107
        %s205 = sand.u32 %s97, 1
        %s206 = scalar_lea.sflag [#allocation3], %s205
        %s207 = sand.u32 %s97, 1
        %s208 = smul.addr %s207, 256
        %s209 = scalar_lea.vmem [#allocation2], %s208
        %p210 = pneg %p131
        %p211 = pneg %p128
        %p212 = pneg %p152
        %p213 = pneg %p149
        %p214 = scmp.lt.s32.totalorder %s21, 1
        %s215 = scalar_select %p214, %s21, 1
        %s216 = smul.addr %s215, 54
        %s217 = smul.addr %s216, 4
        %s218 = scalar_lea.vmem %s0, %s217
        %p220 = scmp.eq.s32.totalorder %s21, 0
        // Predicated region
        $region33: #{tpu_custom_call.1} parent=31 // pred_check
          %p221 = pneg %p220
        $region34: #{tpu_custom_call.1} parent=31 // pred_check_branch
          %223 = sbr.rel (%p221) target = $region36
        $region35: #{tpu_custom_call.1} parent=31 // pred_region
          %224 = vst [vmem:[#allocation4] sm:$0x1] 0.0
          %225 = vst [vmem:[#allocation6] sm:$0x1] 0.0
        $region36: #{tpu_custom_call.1} parent=31 // pred_fallthru
          _
        %v226 = vld [vmem:[%s218 + $0xc] sm:$0xf]
        %v227 = vld [vmem:[%s218 + $0x10] sm:$0xf]
        %v228 = vld [vmem:[%s218 + $0x14] sm:$0x1]
        %v229 = vld [vmem:[%s218 + $0x18] sm:$0xf]
        %v230 = vld [vmem:[%s218 + $0x1c] sm:$0xf]
        %v231 = vld [vmem:[%s218 + $0x20] sm:$0x1]
        %v232 = vld [vmem:[%s218 + $0x24] sm:$0xf]
        %v233 = vld [vmem:[%s218 + $0x28] sm:$0xf]
        %v234 = vld [vmem:[%s218 + $0x2c] sm:$0x1]
        %v235 = vld [vmem:[%s218 + $0x30] sm:$0xf]
        %v236 = vld [vmem:[%s218 + $0x34] sm:$0xf]
        %v237 = vld [vmem:[%s218 + $0x38] sm:$0x1]
        %v238 = vld [vmem:[%s218 + $0x3c] sm:$0xf]
        %v239 = vld [vmem:[%s218 + $0x40] sm:$0xf]
        %v240 = vld [vmem:[%s218 + $0x44] sm:$0x1]
        %v241 = vld [vmem:[%s218 + $0x48] sm:$0xf]
        %v242 = vld [vmem:[%s218 + $0x4c] sm:$0xf]
        %v243 = vld [vmem:[%s218 + $0x50] sm:$0x1]
        %v244 = vld [vmem:[%s218 + $0x54] sm:$0xf]
        %v245 = vld [vmem:[%s218 + $0x58] sm:$0xf]
        %v246 = vld [vmem:[%s218 + $0x5c] sm:$0x1]
        %v247 = vld [vmem:[%s218 + $0x60] sm:$0xf]
        %v248 = vld [vmem:[%s218 + $0x64] sm:$0xf]
        %v249 = vld [vmem:[%s218 + $0x68] sm:$0x1]
        %v250 = vld [vmem:[%s218 + $0x6c] sm:$0xf]
        %v251 = vld [vmem:[%s218 + $0x70] sm:$0xf]
        %v252 = vld [vmem:[%s218 + $0x74] sm:$0x1]
        %v253 = vld [vmem:[%s218 + $0x78] sm:$0xf]
        %v254 = vld [vmem:[%s218 + $0x7c] sm:$0xf]
        %v255 = vld [vmem:[%s218 + $0x80] sm:$0x1]
        %v256 = vld [vmem:[%s218 + $0x84] sm:$0xf]
        %v257 = vld [vmem:[%s218 + $0x88] sm:$0xf]
        %v258 = vld [vmem:[%s218 + $0x8c] sm:$0x1]
        %v259 = vld [vmem:[%s218 + $0x90] sm:$0xf]
        %v260 = vld [vmem:[%s218 + $0x94] sm:$0xf]
        %v261 = vld [vmem:[%s218 + $0x98] sm:$0x1]
        %v262 = vld [vmem:[%s218 + $0x9c] sm:$0xf]
        %v263 = vld [vmem:[%s218 + $0xa0] sm:$0xf]
        %v264 = vld [vmem:[%s218 + $0xa4] sm:$0x1]
        %v265 = vld [vmem:[%s218 + $0xa8] sm:$0xf]
        %v266 = vld [vmem:[%s218 + $0xac] sm:$0xf]
        %v267 = vld [vmem:[%s218 + $0xb0] sm:$0x1]
        %v268 = vld [vmem:[%s218 + $0xb4] sm:$0xf]
        %v269 = vld [vmem:[%s218 + $0xb8] sm:$0xf]
        %v270 = vld [vmem:[%s218 + $0xbc] sm:$0x1]
        %v271 = vld [vmem:[%s218 + $0xc0] sm:$0xf]
        %v272 = vld [vmem:[%s218 + $0xc4] sm:$0xf]
        %v273 = vld [vmem:[%s218 + $0xc8] sm:$0x1]
        %vm274 = vsmask.f32 3328
        %vm275 = vsmask.f32 7440
        %vm276 = vmor %vm274, %vm275
        %v278 = vshrl.u32 %v226, 16
        %v280 = vrot.slane %v278, 4
        %v281 = vshll.u32 %v226, 16
        %v283 = vrot.slane %v281, 5
        %v284 = vor.u32 %v280, %v283
        %v285 = vrot.slane %v284, 4
        %v287 = vshll.u32 %v227, 16
        %v289 = vrot.slane %v287, 5
        %v290 = vsel %vm276, %v285, %v289
        %v291 = vshrl.u32 %v227, 16
        %v293 = vrot.slane %v291, 4
        %v294 = vor.u32 %v293, %v289
        %v295 = vrot.slane %v294, 4
        %v297 = vshll.u32 %v228, 16
        %v299 = vrot.slane %v297, 5
        %v300 = vsel %vm276, %v295, %v299
        %v302 = vshrl.u32 %v229, 16
        %v304 = vrot.slane %v302, 4
        %v305 = vshll.u32 %v229, 16
        %v307 = vrot.slane %v305, 5
        %v308 = vor.u32 %v304, %v307
        %v309 = vrot.slane %v308, 4
        %v311 = vshll.u32 %v230, 16
        %v313 = vrot.slane %v311, 5
        %v314 = vsel %vm276, %v309, %v313
        %v315 = vshrl.u32 %v230, 16
        %v317 = vrot.slane %v315, 4
        %v318 = vor.u32 %v317, %v313
        %v319 = vrot.slane %v318, 4
        %v321 = vshll.u32 %v231, 16
        %v323 = vrot.slane %v321, 5
        %v324 = vsel %vm276, %v319, %v323
        %v326 = vshrl.u32 %v232, 16
        %v328 = vrot.slane %v326, 4
        %v329 = vshll.u32 %v232, 16
        %v331 = vrot.slane %v329, 5
        %v332 = vor.u32 %v328, %v331
        %v333 = vrot.slane %v332, 4
        %v335 = vshll.u32 %v233, 16
        %v337 = vrot.slane %v335, 5
        %v338 = vsel %vm276, %v333, %v337
        %v339 = vshrl.u32 %v233, 16
        %v341 = vrot.slane %v339, 4
        %v342 = vor.u32 %v341, %v337
        %v343 = vrot.slane %v342, 4
        %v345 = vshll.u32 %v234, 16
        %v347 = vrot.slane %v345, 5
        %v348 = vsel %vm276, %v343, %v347
        %v350 = vshrl.u32 %v235, 16
        %v352 = vrot.slane %v350, 4
        %v353 = vshll.u32 %v235, 16
        %v355 = vrot.slane %v353, 5
        %v356 = vor.u32 %v352, %v355
        %v357 = vrot.slane %v356, 4
        %v359 = vshll.u32 %v236, 16
        %v361 = vrot.slane %v359, 5
        %v362 = vsel %vm276, %v357, %v361
        %v363 = vshrl.u32 %v236, 16
        %v365 = vrot.slane %v363, 4
        %v366 = vor.u32 %v365, %v361
        %v367 = vrot.slane %v366, 4
        %v369 = vshll.u32 %v237, 16
        %v371 = vrot.slane %v369, 5
        %v372 = vsel %vm276, %v367, %v371
        %v374 = vshrl.u32 %v238, 16
        %v376 = vrot.slane %v374, 4
        %v377 = vshll.u32 %v238, 16
        %v379 = vrot.slane %v377, 5
        %v380 = vor.u32 %v376, %v379
        %v381 = vrot.slane %v380, 4
        %v383 = vshll.u32 %v239, 16
        %v385 = vrot.slane %v383, 5
        %v386 = vsel %vm276, %v381, %v385
        %v387 = vshrl.u32 %v239, 16
        %v389 = vrot.slane %v387, 4
        %v390 = vor.u32 %v389, %v385
        %v391 = vrot.slane %v390, 4
        %v393 = vshll.u32 %v240, 16
        %v395 = vrot.slane %v393, 5
        %v396 = vsel %vm276, %v391, %v395
        %v398 = vshrl.u32 %v241, 16
        %v400 = vrot.slane %v398, 4
        %v401 = vshll.u32 %v241, 16
        %v403 = vrot.slane %v401, 5
        %v404 = vor.u32 %v400, %v403
        %v405 = vrot.slane %v404, 4
        %v407 = vshll.u32 %v242, 16
        %v409 = vrot.slane %v407, 5
        %v410 = vsel %vm276, %v405, %v409
        %v411 = vshrl.u32 %v242, 16
        %v413 = vrot.slane %v411, 4
        %v414 = vor.u32 %v413, %v409
        %v415 = vrot.slane %v414, 4
        %v417 = vshll.u32 %v243, 16
        %v419 = vrot.slane %v417, 5
        %v420 = vsel %vm276, %v415, %v419
        %v422 = vshrl.u32 %v244, 16
        %v424 = vrot.slane %v422, 4
        %v425 = vshll.u32 %v244, 16
        %v427 = vrot.slane %v425, 5
        %v428 = vor.u32 %v424, %v427
        %v429 = vrot.slane %v428, 4
        %v431 = vshll.u32 %v245, 16
        %v433 = vrot.slane %v431, 5
        %v434 = vsel %vm276, %v429, %v433
        %v435 = vshrl.u32 %v245, 16
        %v437 = vrot.slane %v435, 4
        %v438 = vor.u32 %v437, %v433
        %v439 = vrot.slane %v438, 4
        %v441 = vshll.u32 %v246, 16
        %v443 = vrot.slane %v441, 5
        %v444 = vsel %vm276, %v439, %v443
        %v446 = vshrl.u32 %v247, 16
        %v448 = vrot.slane %v446, 4
        %v449 = vshll.u32 %v247, 16
        %v451 = vrot.slane %v449, 5
        %v452 = vor.u32 %v448, %v451
        %v453 = vrot.slane %v452, 4
        %v455 = vshll.u32 %v248, 16
        %v457 = vrot.slane %v455, 5
        %v458 = vsel %vm276, %v453, %v457
        %v459 = vshrl.u32 %v248, 16
        %v461 = vrot.slane %v459, 4
        %v462 = vor.u32 %v461, %v457
        %v463 = vrot.slane %v462, 4
        %v465 = vshll.u32 %v249, 16
        %v467 = vrot.slane %v465, 5
        %v468 = vsel %vm276, %v463, %v467
        %v470 = vshrl.u32 %v250, 16
        %v472 = vrot.slane %v470, 4
        %v473 = vshll.u32 %v250, 16
        %v475 = vrot.slane %v473, 5
        %v476 = vor.u32 %v472, %v475
        %v477 = vrot.slane %v476, 4
        %v479 = vshll.u32 %v251, 16
        %v481 = vrot.slane %v479, 5
        %v482 = vsel %vm276, %v477, %v481
        %v483 = vshrl.u32 %v251, 16
        %v485 = vrot.slane %v483, 4
        %v486 = vor.u32 %v485, %v481
        %v487 = vrot.slane %v486, 4
        %v489 = vshll.u32 %v252, 16
        %v491 = vrot.slane %v489, 5
        %v492 = vsel %vm276, %v487, %v491
        %v494 = vshrl.u32 %v253, 16
        %v496 = vrot.slane %v494, 4
        %v497 = vshll.u32 %v253, 16
        %v499 = vrot.slane %v497, 5
        %v500 = vor.u32 %v496, %v499
        %v501 = vrot.slane %v500, 4
        %v503 = vshll.u32 %v254, 16
        %v505 = vrot.slane %v503, 5
        %v506 = vsel %vm276, %v501, %v505
        %v507 = vshrl.u32 %v254, 16
        %v509 = vrot.slane %v507, 4
        %v510 = vor.u32 %v509, %v505
        %v511 = vrot.slane %v510, 4
        %v513 = vshll.u32 %v255, 16
        %v515 = vrot.slane %v513, 5
        %v516 = vsel %vm276, %v511, %v515
        %v518 = vshrl.u32 %v256, 16
        %v520 = vrot.slane %v518, 4
        %v521 = vshll.u32 %v256, 16
        %v523 = vrot.slane %v521, 5
        %v524 = vor.u32 %v520, %v523
        %v525 = vrot.slane %v524, 4
        %v527 = vshll.u32 %v257, 16
        %v529 = vrot.slane %v527, 5
        %v530 = vsel %vm276, %v525, %v529
        %v531 = vshrl.u32 %v257, 16
        %v533 = vrot.slane %v531, 4
        %v534 = vor.u32 %v533, %v529
        %v535 = vrot.slane %v534, 4
        %v537 = vshll.u32 %v258, 16
        %v539 = vrot.slane %v537, 5
        %v540 = vsel %vm276, %v535, %v539
        %v542 = vshrl.u32 %v259, 16
        %v544 = vrot.slane %v542, 4
        %v545 = vshll.u32 %v259, 16
        %v547 = vrot.slane %v545, 5
        %v548 = vor.u32 %v544, %v547
        %v549 = vrot.slane %v548, 4
        %v551 = vshll.u32 %v260, 16
        %v553 = vrot.slane %v551, 5
        %v554 = vsel %vm276, %v549, %v553
        %v555 = vshrl.u32 %v260, 16
        %v557 = vrot.slane %v555, 4
        %v558 = vor.u32 %v557, %v553
        %v559 = vrot.slane %v558, 4
        %v561 = vshll.u32 %v261, 16
        %v563 = vrot.slane %v561, 5
        %v564 = vsel %vm276, %v559, %v563
        %v566 = vshrl.u32 %v262, 16
        %v568 = vrot.slane %v566, 4
        %v569 = vshll.u32 %v262, 16
        %v571 = vrot.slane %v569, 5
        %v572 = vor.u32 %v568, %v571
        %v573 = vrot.slane %v572, 4
        %v575 = vshll.u32 %v263, 16
        %v577 = vrot.slane %v575, 5
        %v578 = vsel %vm276, %v573, %v577
        %v579 = vshrl.u32 %v263, 16
        %v581 = vrot.slane %v579, 4
        %v582 = vor.u32 %v581, %v577
        %v583 = vrot.slane %v582, 4
        %v585 = vshll.u32 %v264, 16
        %v587 = vrot.slane %v585, 5
        %v588 = vsel %vm276, %v583, %v587
        %v590 = vshrl.u32 %v265, 16
        %v592 = vrot.slane %v590, 4
        %v593 = vshll.u32 %v265, 16
        %v595 = vrot.slane %v593, 5
        %v596 = vor.u32 %v592, %v595
        %v597 = vrot.slane %v596, 4
        %v599 = vshll.u32 %v266, 16
        %v601 = vrot.slane %v599, 5
        %v602 = vsel %vm276, %v597, %v601
        %v603 = vshrl.u32 %v266, 16
        %v605 = vrot.slane %v603, 4
        %v606 = vor.u32 %v605, %v601
        %v607 = vrot.slane %v606, 4
        %v609 = vshll.u32 %v267, 16
        %v611 = vrot.slane %v609, 5
        %v612 = vsel %vm276, %v607, %v611
        %v614 = vshrl.u32 %v268, 16
        %v616 = vrot.slane %v614, 4
        %v617 = vshll.u32 %v268, 16
        %v619 = vrot.slane %v617, 5
        %v620 = vor.u32 %v616, %v619
        %v621 = vrot.slane %v620, 4
        %v623 = vshll.u32 %v269, 16
        %v625 = vrot.slane %v623, 5
        %v626 = vsel %vm276, %v621, %v625
        %v627 = vshrl.u32 %v269, 16
        %v629 = vrot.slane %v627, 4
        %v630 = vor.u32 %v629, %v625
        %v631 = vrot.slane %v630, 4
        %v633 = vshll.u32 %v270, 16
        %v635 = vrot.slane %v633, 5
        %v636 = vsel %vm276, %v631, %v635
        %v638 = vshrl.u32 %v271, 16
        %v640 = vrot.slane %v638, 4
        %v641 = vshll.u32 %v271, 16
        %v643 = vrot.slane %v641, 5
        %v644 = vor.u32 %v640, %v643
        %v645 = vrot.slane %v644, 4
        %v647 = vshll.u32 %v272, 16
        %v649 = vrot.slane %v647, 5
        %v650 = vsel %vm276, %v645, %v649
        %v651 = vshrl.u32 %v272, 16
        %v653 = vrot.slane %v651, 4
        %v654 = vor.u32 %v653, %v649
        %v655 = vrot.slane %v654, 4
        %v657 = vshll.u32 %v273, 16
        %v659 = vrot.slane %v657, 5
        %v660 = vsel %vm276, %v655, %v659
        %v661 = vld [vmem:[%s1] sm:$0x3]
        %v662 = vld [vmem:[%s2] sm:$0x1]
        %v664 = vlaneseq
        %v665 = vshrl.u32 %v664, 7
        %v666 = vsub.s32 0, %v665
        %v667 = vrot.slane %v662, %v666
        %v669 = vunpack.c.l.b16 %v290
        %v670 = vunpack.c.l.b16 %v300
        %v671 = vunpack.c.l.b16 %v314
        %v672 = vunpack.c.l.b16 %v324
        %v673 = vunpack.c.l.b16 %v338
        %v674 = vunpack.c.l.b16 %v348
        %v675 = vunpack.c.l.b16 %v362
        %v676 = vunpack.c.l.b16 %v372
        %v677 = vunpack.c.l.b16 %v386
        %v678 = vunpack.c.l.b16 %v396
        %v679 = vunpack.c.l.b16 %v410
        %v680 = vunpack.c.l.b16 %v420
        %v681 = vunpack.c.l.b16 %v434
        %v682 = vunpack.c.l.b16 %v444
        %v683 = vunpack.c.l.b16 %v458
        %v684 = vunpack.c.l.b16 %v468
        %v685 = vunpack.c.l.b16 %v482
        %v686 = vunpack.c.l.b16 %v492
        %v687 = vunpack.c.l.b16 %v506
        %v688 = vunpack.c.l.b16 %v516
        %v689 = vunpack.c.l.b16 %v530
        %v690 = vunpack.c.l.b16 %v540
        %v691 = vunpack.c.l.b16 %v554
        %v692 = vunpack.c.l.b16 %v564
        %v693 = vunpack.c.l.b16 %v578
        %v694 = vunpack.c.l.b16 %v588
        %v695 = vunpack.c.l.b16 %v602
        %v696 = vunpack.c.l.b16 %v612
        %v697 = vunpack.c.l.b16 %v626
        %v698 = vunpack.c.l.b16 %v636
        %v699 = vunpack.c.l.b16 %v650
        %v700 = vunpack.c.l.b16 %v660
        %v701 = vpack.c.b16 %v670, %v669
        %v702 = vpack.c.b16 %v672, %v671
        %v703 = vpack.c.b16 %v674, %v673
        %v704 = vpack.c.b16 %v676, %v675
        %v705 = vpack.c.b16 %v678, %v677
        %v706 = vpack.c.b16 %v680, %v679
        %v707 = vpack.c.b16 %v682, %v681
        %v708 = vpack.c.b16 %v684, %v683
        %v709 = vpack.c.b16 %v686, %v685
        %v710 = vpack.c.b16 %v688, %v687
        %v711 = vpack.c.b16 %v690, %v689
        %v712 = vpack.c.b16 %v692, %v691
        %v713 = vpack.c.b16 %v694, %v693
        %v714 = vpack.c.b16 %v696, %v695
        %v715 = vpack.c.b16 %v698, %v697
        %v716 = vpack.c.b16 %v700, %v699
        %vm717 = vcmask 31744
        %v719 = vsel %vm717, %v701, 0
        %v722 = vsel %vm717, %v702, 0
        %v725 = vsel %vm717, %v703, 0
        %v728 = vsel %vm717, %v704, 0
        %v731 = vsel %vm717, %v705, 0
        %v734 = vsel %vm717, %v706, 0
        %v737 = vsel %vm717, %v707, 0
        %v740 = vsel %vm717, %v708, 0
        %v743 = vsel %vm717, %v709, 0
        %v746 = vsel %vm717, %v710, 0
        %v749 = vsel %vm717, %v711, 0
        %v752 = vsel %vm717, %v712, 0
        %v755 = vsel %vm717, %v713, 0
        %v758 = vsel %vm717, %v714, 0
        %v761 = vsel %vm717, %v715, 0
        %v764 = vsel %vm717, %v716, 0
        %vm766 = vcmask 1041408
        %v768 = vsel %vm766, %v661, 0
        %770 = vmatprep.subr.bf16.mxu0 0
        %771 = vmatpush1.bf16.msra.mxu0 0
        %772 = vmatprep.subr.bf16.mxu0 0
        %773 = vmatpush1.bf16.msra.mxu0 0
        %774 = vmatprep.subr.bf16.mxu0 0
        %775 = vmatpush1.bf16.msra.mxu0 0
        %776 = vmatprep.subr.bf16.mxu0 0
        %777 = vmatpush1.bf16.msra.mxu0 0
        %778 = vmatprep.subr.bf16.mxu0 0
        %779 = vmatpush1.bf16.msra.mxu0 0
        %780 = vmatprep.subr.bf16.mxu0 0
        %781 = vmatpush1.bf16.msra.mxu0 0
        %782 = vmatprep.subr.bf16.mxu0 0
        %783 = vmatpush1.bf16.msra.mxu0 0
        %784 = vmatprep.subr.bf16.mxu0 0
        %785 = vmatpush1.bf16.msra.mxu0 %v768
        %786 = vmatprep.subr.bf16.mxu0 0
        %787 = vmatpush2.bf16.msra.mxu0 0
        %788 = vmatprep.subr.bf16.mxu0 0
        %789 = vmatpush2.bf16.msra.mxu0 0
        %790 = vmatprep.subr.bf16.mxu0 0
        %791 = vmatpush2.bf16.msra.mxu0 0
        %792 = vmatprep.subr.bf16.mxu0 0
        %793 = vmatpush2.bf16.msra.mxu0 0
        %794 = vmatprep.subr.bf16.mxu0 0
        %795 = vmatpush2.bf16.msra.mxu0 0
        %796 = vmatprep.subr.bf16.mxu0 0
        %797 = vmatpush2.bf16.msra.mxu0 0
        %798 = vmatprep.subr.bf16.mxu0 0
        %799 = vmatpush2.bf16.msra.mxu0 0
        %800 = vmatprep.subr.bf16.mxu0 0
        %801 = vmatpush2.bf16.msra.mxu0 0
        %802 = vmatprep.mubr.bf16.mxu0 0
        %803 = vmatmul.mubr.bf16.gmra.mxu0 %v719
        %v804 = vpop.f32.mrf.mxu0
        %v805 = vadd.f32 %v667, %v804
        %v806 = vpop.f32.mrf.mxu0
        %v807 = vpop.f32.mrf.mxu0
        %v808 = vadd.f32 %v667, %v807
        %v809 = vpop.f32.mrf.mxu0
        %810 = vmatprep.mubr.bf16.mxu0 0
        %811 = vmatmul.mubr.bf16.gmra.mxu0 %v722
        %v812 = vpop.f32.mrf.mxu0
        %v813 = vadd.f32 %v667, %v812
        %v814 = vpop.f32.mrf.mxu0
        %v815 = vpop.f32.mrf.mxu0
        %v816 = vadd.f32 %v667, %v815
        %v817 = vpop.f32.mrf.mxu0
        %818 = vmatprep.mubr.bf16.mxu0 0
        %819 = vmatmul.mubr.bf16.gmra.mxu0 %v725
        %v820 = vpop.f32.mrf.mxu0
        %v821 = vadd.f32 %v667, %v820
        %v822 = vpop.f32.mrf.mxu0
        %v823 = vpop.f32.mrf.mxu0
        %v824 = vadd.f32 %v667, %v823
        %v825 = vpop.f32.mrf.mxu0
        %826 = vmatprep.mubr.bf16.mxu0 0
        %827 = vmatmul.mubr.bf16.gmra.mxu0 %v728
        %v828 = vpop.f32.mrf.mxu0
        %v829 = vadd.f32 %v667, %v828
        %v830 = vpop.f32.mrf.mxu0
        %v831 = vpop.f32.mrf.mxu0
        %v832 = vadd.f32 %v667, %v831
        %v833 = vpop.f32.mrf.mxu0
        %834 = vmatprep.mubr.bf16.mxu0 0
        %835 = vmatmul.mubr.bf16.gmra.mxu0 %v731
        %v836 = vpop.f32.mrf.mxu0
        %v837 = vadd.f32 %v667, %v836
        %v838 = vpop.f32.mrf.mxu0
        %v839 = vpop.f32.mrf.mxu0
        %v840 = vadd.f32 %v667, %v839
        %v841 = vpop.f32.mrf.mxu0
        %842 = vmatprep.mubr.bf16.mxu0 0
        %843 = vmatmul.mubr.bf16.gmra.mxu0 %v734
        %v844 = vpop.f32.mrf.mxu0
        %v845 = vadd.f32 %v667, %v844
        %v846 = vpop.f32.mrf.mxu0
        %v847 = vpop.f32.mrf.mxu0
        %v848 = vadd.f32 %v667, %v847
        %v849 = vpop.f32.mrf.mxu0
        %850 = vmatprep.mubr.bf16.mxu0 0
        %851 = vmatmul.mubr.bf16.gmra.mxu0 %v737
        %v852 = vpop.f32.mrf.mxu0
        %v853 = vadd.f32 %v667, %v852
        %v854 = vpop.f32.mrf.mxu0
        %v855 = vpop.f32.mrf.mxu0
        %v856 = vadd.f32 %v667, %v855
        %v857 = vpop.f32.mrf.mxu0
        %858 = vmatprep.mubr.bf16.mxu0 0
        %859 = vmatmul.mubr.bf16.gmra.mxu0 %v740
        %v860 = vpop.f32.mrf.mxu0
        %v861 = vadd.f32 %v667, %v860
        %v862 = vpop.f32.mrf.mxu0
        %v863 = vpop.f32.mrf.mxu0
        %v864 = vadd.f32 %v667, %v863
        %v865 = vpop.f32.mrf.mxu0
        %866 = vmatprep.mubr.bf16.mxu0 0
        %867 = vmatmul.mubr.bf16.gmra.mxu0 %v743
        %v868 = vpop.f32.mrf.mxu0
        %v869 = vadd.f32 %v667, %v868
        %v870 = vpop.f32.mrf.mxu0
        %v871 = vpop.f32.mrf.mxu0
        %v872 = vadd.f32 %v667, %v871
        %v873 = vpop.f32.mrf.mxu0
        %874 = vmatprep.mubr.bf16.mxu0 0
        %875 = vmatmul.mubr.bf16.gmra.mxu0 %v746
        %v876 = vpop.f32.mrf.mxu0
        %v877 = vadd.f32 %v667, %v876
        %v878 = vpop.f32.mrf.mxu0
        %v879 = vpop.f32.mrf.mxu0
        %v880 = vadd.f32 %v667, %v879
        %v881 = vpop.f32.mrf.mxu0
        %882 = vmatprep.mubr.bf16.mxu0 0
        %883 = vmatmul.mubr.bf16.gmra.mxu0 %v749
        %v884 = vpop.f32.mrf.mxu0
        %v885 = vadd.f32 %v667, %v884
        %v886 = vpop.f32.mrf.mxu0
        %v887 = vpop.f32.mrf.mxu0
        %v888 = vadd.f32 %v667, %v887
        %v889 = vpop.f32.mrf.mxu0
        %890 = vmatprep.mubr.bf16.mxu0 0
        %891 = vmatmul.mubr.bf16.gmra.mxu0 %v752
        %v892 = vpop.f32.mrf.mxu0
        %v893 = vadd.f32 %v667, %v892
        %v894 = vpop.f32.mrf.mxu0
        %v895 = vpop.f32.mrf.mxu0
        %v896 = vadd.f32 %v667, %v895
        %v897 = vpop.f32.mrf.mxu0
        %898 = vmatprep.mubr.bf16.mxu0 0
        %899 = vmatmul.mubr.bf16.gmra.mxu0 %v755
        %v900 = vpop.f32.mrf.mxu0
        %v901 = vadd.f32 %v667, %v900
        %v902 = vpop.f32.mrf.mxu0
        %v903 = vpop.f32.mrf.mxu0
        %v904 = vadd.f32 %v667, %v903
        %v905 = vpop.f32.mrf.mxu0
        %906 = vmatprep.mubr.bf16.mxu0 0
        %907 = vmatmul.mubr.bf16.gmra.mxu0 %v758
        %v908 = vpop.f32.mrf.mxu0
        %v909 = vadd.f32 %v667, %v908
        %v910 = vpop.f32.mrf.mxu0
        %v911 = vpop.f32.mrf.mxu0
        %v912 = vadd.f32 %v667, %v911
        %v913 = vpop.f32.mrf.mxu0
        %914 = vmatprep.mubr.bf16.mxu0 0
        %915 = vmatmul.mubr.bf16.gmra.mxu0 %v761
        %v916 = vpop.f32.mrf.mxu0
        %v917 = vadd.f32 %v667, %v916
        %v918 = vpop.f32.mrf.mxu0
        %v919 = vpop.f32.mrf.mxu0
        %v920 = vadd.f32 %v667, %v919
        %v921 = vpop.f32.mrf.mxu0
        %922 = vmatprep.mubr.bf16.mxu0 0
        %923 = vmatmul.mubr.bf16.gmra.mxu0 %v764
        %v924 = vpop.f32.mrf.mxu0
        %v925 = vadd.f32 %v667, %v924
        %v926 = vpop.f32.mrf.mxu0
        %v927 = vpop.f32.mrf.mxu0
        %v928 = vadd.f32 %v667, %v927
        %v929 = vpop.f32.mrf.mxu0
        %930 = vdwg.mxu0
        %v931 = vmul.f32 %v805, 0.5
        %v932 = vmul.f32 %v808, 0.5
        %v933 = vmul.f32 %v813, 0.5
        %v934 = vmul.f32 %v816, 0.5
        %v935 = vmul.f32 %v821, 0.5
        %v936 = vmul.f32 %v824, 0.5
        %v937 = vmul.f32 %v829, 0.5
        %v938 = vmul.f32 %v832, 0.5
        %v939 = vmul.f32 %v837, 0.5
        %v940 = vmul.f32 %v840, 0.5
        %v941 = vmul.f32 %v845, 0.5
        %v942 = vmul.f32 %v848, 0.5
        %v943 = vmul.f32 %v853, 0.5
        %v944 = vmul.f32 %v856, 0.5
        %v945 = vmul.f32 %v861, 0.5
        %v946 = vmul.f32 %v864, 0.5
        %v947 = vmul.f32 %v869, 0.5
        %v948 = vmul.f32 %v872, 0.5
        %v949 = vmul.f32 %v877, 0.5
        %v950 = vmul.f32 %v880, 0.5
        %v951 = vmul.f32 %v885, 0.5
        %v952 = vmul.f32 %v888, 0.5
        %v953 = vmul.f32 %v893, 0.5
        %v954 = vmul.f32 %v896, 0.5
        %v955 = vmul.f32 %v901, 0.5
        %v956 = vmul.f32 %v904, 0.5
        %v957 = vmul.f32 %v909, 0.5
        %v958 = vmul.f32 %v912, 0.5
        %v959 = vmul.f32 %v917, 0.5
        %v960 = vmul.f32 %v920, 0.5
        %v961 = vmul.f32 %v925, 0.5
        %v962 = vmul.f32 %v928, 0.5
        %v963 = vmul.f32 %v805, 0.70710677
        %v964 = vmul.f32 %v808, 0.70710677
        %v965 = vmul.f32 %v813, 0.70710677
        %v966 = vmul.f32 %v816, 0.70710677
        %v967 = vmul.f32 %v821, 0.70710677
        %v968 = vmul.f32 %v824, 0.70710677
        %v969 = vmul.f32 %v829, 0.70710677
        %v970 = vmul.f32 %v832, 0.70710677
        %v971 = vmul.f32 %v837, 0.70710677
        %v972 = vmul.f32 %v840, 0.70710677
        %v973 = vmul.f32 %v845, 0.70710677
        %v974 = vmul.f32 %v848, 0.70710677
        %v975 = vmul.f32 %v853, 0.70710677
        %v976 = vmul.f32 %v856, 0.70710677
        %v977 = vmul.f32 %v861, 0.70710677
        %v978 = vmul.f32 %v864, 0.70710677
        %v979 = vmul.f32 %v869, 0.70710677
        %v980 = vmul.f32 %v872, 0.70710677
        %v981 = vmul.f32 %v877, 0.70710677
        %v982 = vmul.f32 %v880, 0.70710677
        %v983 = vmul.f32 %v885, 0.70710677
        %v984 = vmul.f32 %v888, 0.70710677
        %v985 = vmul.f32 %v893, 0.70710677
        %v986 = vmul.f32 %v896, 0.70710677
        %v987 = vmul.f32 %v901, 0.70710677
        %v988 = vmul.f32 %v904, 0.70710677
        %v989 = vmul.f32 %v909, 0.70710677
        %v990 = vmul.f32 %v912, 0.70710677
        %v991 = vmul.f32 %v917, 0.70710677
        %v992 = vmul.f32 %v920, 0.70710677
        %v993 = vmul.f32 %v925, 0.70710677
        %v994 = vmul.f32 %v928, 0.70710677
        %v995 = verf.f32.pop %v963
        %v996 = verf.f32.pop %v964
        %v997 = verf.f32.pop %v965
        %v998 = verf.f32.pop %v966
        %v999 = verf.f32.pop %v967
        %v1000 = verf.f32.pop %v968
        %v1001 = verf.f32.pop %v969
        %v1002 = verf.f32.pop %v970
        %v1003 = verf.f32.pop %v971
        %v1004 = verf.f32.pop %v972
        %v1005 = verf.f32.pop %v973
        %v1006 = verf.f32.pop %v974
        %v1007 = verf.f32.pop %v975
        %v1008 = verf.f32.pop %v976
        %v1009 = verf.f32.pop %v977
        %v1010 = verf.f32.pop %v978
        %v1011 = verf.f32.pop %v979
        %v1012 = verf.f32.pop %v980
        %v1013 = verf.f32.pop %v981
        %v1014 = verf.f32.pop %v982
        %v1015 = verf.f32.pop %v983
        %v1016 = verf.f32.pop %v984
        %v1017 = verf.f32.pop %v985
        %v1018 = verf.f32.pop %v986
        %v1019 = verf.f32.pop %v987
        %v1020 = verf.f32.pop %v988
        %v1021 = verf.f32.pop %v989
        %v1022 = verf.f32.pop %v990
        %v1023 = verf.f32.pop %v991
        %v1024 = verf.f32.pop %v992
        %v1025 = verf.f32.pop %v993
        %v1026 = verf.f32.pop %v994
        %v1027 = vadd.f32 %v995, 1.0
        %v1028 = vadd.f32 %v996, 1.0
        %v1029 = vadd.f32 %v997, 1.0
        %v1030 = vadd.f32 %v998, 1.0
        %v1031 = vadd.f32 %v999, 1.0
        %v1032 = vadd.f32 %v1000, 1.0
        %v1033 = vadd.f32 %v1001, 1.0
        %v1034 = vadd.f32 %v1002, 1.0
        %v1035 = vadd.f32 %v1003, 1.0
        %v1036 = vadd.f32 %v1004, 1.0
        %v1037 = vadd.f32 %v1005, 1.0
        %v1038 = vadd.f32 %v1006, 1.0
        %v1039 = vadd.f32 %v1007, 1.0
        %v1040 = vadd.f32 %v1008, 1.0
        %v1041 = vadd.f32 %v1009, 1.0
        %v1042 = vadd.f32 %v1010, 1.0
        %v1043 = vadd.f32 %v1011, 1.0
        %v1044 = vadd.f32 %v1012, 1.0
        %v1045 = vadd.f32 %v1013, 1.0
        %v1046 = vadd.f32 %v1014, 1.0
        %v1047 = vadd.f32 %v1015, 1.0
        %v1048 = vadd.f32 %v1016, 1.0
        %v1049 = vadd.f32 %v1017, 1.0
        %v1050 = vadd.f32 %v1018, 1.0
        %v1051 = vadd.f32 %v1019, 1.0
        %v1052 = vadd.f32 %v1020, 1.0
        %v1053 = vadd.f32 %v1021, 1.0
        %v1054 = vadd.f32 %v1022, 1.0
        %v1055 = vadd.f32 %v1023, 1.0
        %v1056 = vadd.f32 %v1024, 1.0
        %v1057 = vadd.f32 %v1025, 1.0
        %v1058 = vadd.f32 %v1026, 1.0
        %v1059 = vmul.f32 %v931, %v1027
        %v1060 = vmul.f32 %v932, %v1028
        %v1061 = vmul.f32 %v933, %v1029
        %v1062 = vmul.f32 %v934, %v1030
        %v1063 = vmul.f32 %v935, %v1031
        %v1064 = vmul.f32 %v936, %v1032
        %v1065 = vmul.f32 %v937, %v1033
        %v1066 = vmul.f32 %v938, %v1034
        %v1067 = vmul.f32 %v939, %v1035
        %v1068 = vmul.f32 %v940, %v1036
        %v1069 = vmul.f32 %v941, %v1037
        %v1070 = vmul.f32 %v942, %v1038
        %v1071 = vmul.f32 %v943, %v1039
        %v1072 = vmul.f32 %v944, %v1040
        %v1073 = vmul.f32 %v945, %v1041
        %v1074 = vmul.f32 %v946, %v1042
        %v1075 = vmul.f32 %v947, %v1043
        %v1076 = vmul.f32 %v948, %v1044
        %v1077 = vmul.f32 %v949, %v1045
        %v1078 = vmul.f32 %v950, %v1046
        %v1079 = vmul.f32 %v951, %v1047
        %v1080 = vmul.f32 %v952, %v1048
        %v1081 = vmul.f32 %v953, %v1049
        %v1082 = vmul.f32 %v954, %v1050
        %v1083 = vmul.f32 %v955, %v1051
        %v1084 = vmul.f32 %v956, %v1052
        %v1085 = vmul.f32 %v957, %v1053
        %v1086 = vmul.f32 %v958, %v1054
        %v1087 = vmul.f32 %v959, %v1055
        %v1088 = vmul.f32 %v960, %v1056
        %v1089 = vmul.f32 %v961, %v1057
        %v1090 = vmul.f32 %v962, %v1058
        %1091 = vst [vmem:[%s209] sm:$0xff] %v1059
        %1092 = vst [vmem:[%s209 + $0x8] sm:$0xff] %v1060
        %1093 = vst [vmem:[%s209 + $0x10] sm:$0xff] %v1061
        %1094 = vst [vmem:[%s209 + $0x18] sm:$0xff] %v1062
        %1095 = vst [vmem:[%s209 + $0x20] sm:$0xff] %v1063
        %1096 = vst [vmem:[%s209 + $0x28] sm:$0xff] %v1064
        %1097 = vst [vmem:[%s209 + $0x30] sm:$0xff] %v1065
        %1098 = vst [vmem:[%s209 + $0x38] sm:$0xff] %v1066
        %1099 = vst [vmem:[%s209 + $0x40] sm:$0xff] %v1067
        %1100 = vst [vmem:[%s209 + $0x48] sm:$0xff] %v1068
        %1101 = vst [vmem:[%s209 + $0x50] sm:$0xff] %v1069
        %1102 = vst [vmem:[%s209 + $0x58] sm:$0xff] %v1070
        %1103 = vst [vmem:[%s209 + $0x60] sm:$0xff] %v1071
        %1104 = vst [vmem:[%s209 + $0x68] sm:$0xff] %v1072
        %1105 = vst [vmem:[%s209 + $0x70] sm:$0xff] %v1073
        %1106 = vst [vmem:[%s209 + $0x78] sm:$0xff] %v1074
        %1107 = vst [vmem:[%s209 + $0x80] sm:$0xff] %v1075
        %1108 = vst [vmem:[%s209 + $0x88] sm:$0xff] %v1076
        %1109 = vst [vmem:[%s209 + $0x90] sm:$0xff] %v1077
        %1110 = vst [vmem:[%s209 + $0x98] sm:$0xff] %v1078
        %1111 = vst [vmem:[%s209 + $0xa0] sm:$0xff] %v1079
        %1112 = vst [vmem:[%s209 + $0xa8] sm:$0xff] %v1080
        %1113 = vst [vmem:[%s209 + $0xb0] sm:$0xff] %v1081
        %1114 = vst [vmem:[%s209 + $0xb8] sm:$0xff] %v1082
        %1115 = vst [vmem:[%s209 + $0xc0] sm:$0xff] %v1083
        %1116 = vst [vmem:[%s209 + $0xc8] sm:$0xff] %v1084
        %1117 = vst [vmem:[%s209 + $0xd0] sm:$0xff] %v1085
        %1118 = vst [vmem:[%s209 + $0xd8] sm:$0xff] %v1086
        %1119 = vst [vmem:[%s209 + $0xe0] sm:$0xff] %v1087
        %1120 = vst [vmem:[%s209 + $0xe8] sm:$0xff] %v1088
        %1121 = vst [vmem:[%s209 + $0xf0] sm:$0xff] %v1089
        %1122 = vst [vmem:[%s209 + $0xf8] sm:$0xff] %v1090
        %v1123 = vld [vmem:[#allocation4] sm:$0x1]
        %v1124 = vadd.f32 %v1059, %v1060
        %v1125 = vadd.f32 %v1124, %v1061
        %v1126 = vadd.f32 %v1125, %v1062
        %v1127 = vadd.f32 %v1126, %v1063
        %v1128 = vadd.f32 %v1127, %v1064
        %v1129 = vadd.f32 %v1128, %v1065
        %v1130 = vadd.f32 %v1129, %v1066
        %v1131 = vadd.f32 %v1130, %v1067
        %v1132 = vadd.f32 %v1131, %v1068
        %v1133 = vadd.f32 %v1132, %v1069
        %v1134 = vadd.f32 %v1133, %v1070
        %v1135 = vadd.f32 %v1134, %v1071
        %v1136 = vadd.f32 %v1135, %v1072
        %v1137 = vadd.f32 %v1136, %v1073
        %v1138 = vadd.f32 %v1137, %v1074
        %v1139 = vadd.f32 %v1138, %v1075
        %v1140 = vadd.f32 %v1139, %v1076
        %v1141 = vadd.f32 %v1140, %v1077
        %v1142 = vadd.f32 %v1141, %v1078
        %v1143 = vadd.f32 %v1142, %v1079
        %v1144 = vadd.f32 %v1143, %v1080
        %v1145 = vadd.f32 %v1144, %v1081
        %v1146 = vadd.f32 %v1145, %v1082
        %v1147 = vadd.f32 %v1146, %v1083
        %v1148 = vadd.f32 %v1147, %v1084
        %v1149 = vadd.f32 %v1148, %v1085
        %v1150 = vadd.f32 %v1149, %v1086
        %v1151 = vadd.f32 %v1150, %v1087
        %v1152 = vadd.f32 %v1151, %v1088
        %v1153 = vadd.f32 %v1152, %v1089
        %v1154 = vadd.f32 %v1153, %v1090
        %v1155 = vrot.slane %v1154, 4
        %v1156 = vadd.f32 %v1154, %v1155
        %v1157 = vrot.slane %v1156, 2
        %v1158 = vadd.f32 %v1156, %v1157
        %v1159 = vrot.slane %v1158, 1
        %v1160 = vadd.f32 %v1158, %v1159
        %v1161 = vadd.f32 %v1123, %v1160
        %1162 = vst [vmem:[#allocation4] sm:$0x1] %v1161
        %v1163 = vld [vmem:[#allocation6] sm:$0x1]
        %v1164 = vmul.f32 %v1059, %v1059
        %v1165 = vmul.f32 %v1060, %v1060
        %v1166 = vmul.f32 %v1061, %v1061
        %v1167 = vmul.f32 %v1062, %v1062
        %v1168 = vmul.f32 %v1063, %v1063
        %v1169 = vmul.f32 %v1064, %v1064
        %v1170 = vmul.f32 %v1065, %v1065
        %v1171 = vmul.f32 %v1066, %v1066
        %v1172 = vmul.f32 %v1067, %v1067
        %v1173 = vmul.f32 %v1068, %v1068
        %v1174 = vmul.f32 %v1069, %v1069
        %v1175 = vmul.f32 %v1070, %v1070
        %v1176 = vmul.f32 %v1071, %v1071
        %v1177 = vmul.f32 %v1072, %v1072
        %v1178 = vmul.f32 %v1073, %v1073
        %v1179 = vmul.f32 %v1074, %v1074
        %v1180 = vmul.f32 %v1075, %v1075
        %v1181 = vmul.f32 %v1076, %v1076
        %v1182 = vmul.f32 %v1077, %v1077
        %v1183 = vmul.f32 %v1078, %v1078
        %v1184 = vmul.f32 %v1079, %v1079
        %v1185 = vmul.f32 %v1080, %v1080
        %v1186 = vmul.f32 %v1081, %v1081
        %v1187 = vmul.f32 %v1082, %v1082
        %v1188 = vmul.f32 %v1083, %v1083
        %v1189 = vmul.f32 %v1084, %v1084
        %v1190 = vmul.f32 %v1085, %v1085
        %v1191 = vmul.f32 %v1086, %v1086
        %v1192 = vmul.f32 %v1087, %v1087
        %v1193 = vmul.f32 %v1088, %v1088
        %v1194 = vmul.f32 %v1089, %v1089
        %v1195 = vmul.f32 %v1090, %v1090
        %v1196 = vadd.f32 %v1164, %v1165
        %v1197 = vadd.f32 %v1196, %v1166
        %v1198 = vadd.f32 %v1197, %v1167
        %v1199 = vadd.f32 %v1198, %v1168
        %v1200 = vadd.f32 %v1199, %v1169
        %v1201 = vadd.f32 %v1200, %v1170
        %v1202 = vadd.f32 %v1201, %v1171
        %v1203 = vadd.f32 %v1202, %v1172
        %v1204 = vadd.f32 %v1203, %v1173
        %v1205 = vadd.f32 %v1204, %v1174
        %v1206 = vadd.f32 %v1205, %v1175
        %v1207 = vadd.f32 %v1206, %v1176
        %v1208 = vadd.f32 %v1207, %v1177
        %v1209 = vadd.f32 %v1208, %v1178
        %v1210 = vadd.f32 %v1209, %v1179
        %v1211 = vadd.f32 %v1210, %v1180
        %v1212 = vadd.f32 %v1211, %v1181
        %v1213 = vadd.f32 %v1212, %v1182
        %v1214 = vadd.f32 %v1213, %v1183
        %v1215 = vadd.f32 %v1214, %v1184
        %v1216 = vadd.f32 %v1215, %v1185
        %v1217 = vadd.f32 %v1216, %v1186
        %v1218 = vadd.f32 %v1217, %v1187
        %v1219 = vadd.f32 %v1218, %v1188
        %v1220 = vadd.f32 %v1219, %v1189
        %v1221 = vadd.f32 %v1220, %v1190
        %v1222 = vadd.f32 %v1221, %v1191
        %v1223 = vadd.f32 %v1222, %v1192
        %v1224 = vadd.f32 %v1223, %v1193
        %v1225 = vadd.f32 %v1224, %v1194
        %v1226 = vadd.f32 %v1225, %v1195
        %v1227 = vrot.slane %v1226, 4
        %v1228 = vadd.f32 %v1226, %v1227
        %v1229 = vrot.slane %v1228, 2
        %v1230 = vadd.f32 %v1228, %v1229
        %v1231 = vrot.slane %v1230, 1
        %v1232 = vadd.f32 %v1230, %v1231
        %v1233 = vadd.f32 %v1163, %v1232
        %1234 = vst [vmem:[#allocation6] sm:$0x1] %v1233
        %s1235 = sand.u32 %s97, 1
        %s1236 = scalar_lea.sflag [#allocation3], %s1235
        %s1237 = sand.u32 %s97, 1
        %s1238 = smul.addr %s1237, 256
        %s1239 = scalar_lea.vmem [#allocation2], %s1238
        // Predicated region
        $region37: #{tpu_custom_call.1} parent=31 // pred_check
          %p1240 = pneg %p107
        $region38: #{tpu_custom_call.1} parent=31 // pred_check_branch
          %1242 = sbr.rel (%p1240) target = $region40
        $region39: #{tpu_custom_call.1} parent=31 // pred_region
          %s1244 = ssub.s32 4096, 4096
          %1245 = vsyncadd %s1236, %s1244
          %s1246 = smul.addr %s21, 32
          %s1247 = smul.addr %s1246, 128
          %s1248 = scalar_lea.hbm %s3, %s1247
          %s1249 = sshll.u32 %s1239, 4
          %s1250 = int_to_ptr.vmem [resolvable:$true] %s1249
          %1255 = dma.vmem_to_hbm [thread:$0]  %s1250, 4096, %s1248, %s1236, 128, 128, 8
        $region40: #{tpu_custom_call.1} parent=31 // pred_fallthru
          _
        // Predicated region
        $region41: #{tpu_custom_call.1} parent=31 // pred_check
          %p1256 = pneg %p128
        $region42: #{tpu_custom_call.1} parent=31 // pred_check_branch
          %1258 = sbr.rel (%p1256) target = $region44
        $region43: #{tpu_custom_call.1} parent=31 // pred_region
          %s1260 = ssub.s32 16, 16
          %1261 = vsyncadd [#allocation5], %s1260
          %s1263 = sshll.u32 [#allocation4], 4
          %s1264 = int_to_ptr.vmem [resolvable:$true] %s1263
          %1266 = dma.vmem_to_hbm [thread:$0]  %s1264, 16, %s4, [#allocation5]
        $region44: #{tpu_custom_call.1} parent=31 // pred_fallthru
          _
        // Predicated region
        $region45: #{tpu_custom_call.1} parent=31 // pred_check
          %p1267 = pneg %p149
        $region46: #{tpu_custom_call.1} parent=31 // pred_check_branch
          %1269 = sbr.rel (%p1267) target = $region48
        $region47: #{tpu_custom_call.1} parent=31 // pred_region
          %s1271 = ssub.s32 16, 16
          %1272 = vsyncadd [#allocation5], %s1271
          %s1274 = sshll.u32 [#allocation6], 4
          %s1275 = int_to_ptr.vmem [resolvable:$true] %s1274
          %1277 = dma.vmem_to_hbm [thread:$0]  %s1275, 16, %s5, [#allocation5]
        $region48: #{tpu_custom_call.1} parent=31 // pred_fallthru
          _
        // Predicated region
        $region49: #{tpu_custom_call.1} parent=31 // pred_check
          %p1278 = pneg %p128
        $region50: #{tpu_custom_call.1} parent=31 // pred_check_branch
          %1280 = sbr.rel (%p1278) target = $region52
        $region51: #{tpu_custom_call.1} parent=31 // pred_region
          %1281 = dma.done [#allocation5], 16
        $region52: #{tpu_custom_call.1} parent=31 // pred_fallthru
          _
        // Predicated region
        $region53: #{tpu_custom_call.1} parent=31 // pred_check
          %p1282 = pneg %p149
        $region54: #{tpu_custom_call.1} parent=31 // pred_check_branch
          %1284 = sbr.rel (%p1282) target = $region56
        $region55: #{tpu_custom_call.1} parent=31 // pred_region
          %1285 = dma.done [#allocation5], 16
        $region56: #{tpu_custom_call.1} parent=31 // pred_fallthru
          _
      $region32: #{tpu_custom_call.1} parent=5 // pred_fallthru
        _
      %p1286 = scmp.le.s32.totalorder 2, %s16
      // Predicated region
      $region57: #{tpu_custom_call.1} parent=5 // pred_check
        %p1287 = pneg %p1286
      $region58: #{tpu_custom_call.1} parent=5 // pred_check_branch
        %1289 = sbr.rel (%p1287) target = $region60
      $region59: #{tpu_custom_call.1} parent=5 // pred_region
        %s1290 = ssub.s32 %s16, 2
        // Predicated region
        $region61: #{tpu_custom_call.1} parent=59 // pred_check
          %p1291 = pneg %p113
        $region62: #{tpu_custom_call.1} parent=59 // pred_check_branch
          %1293 = sbr.rel (%p1291) target = $region64
        $region63: #{tpu_custom_call.1} parent=59 // pred_region
          %s1294 = sand.u32 %s98, 1
          %s1295 = scalar_lea.sflag [#allocation3], %s1294
          %s1296 = sand.u32 %s98, 1
          %s1297 = smul.addr %s1296, 256
          %s1298 = scalar_lea.vmem [#allocation2], %s1297
          %1299 = dma.done %s1295, 4096
        $region64: #{tpu_custom_call.1} parent=59 // pred_fallthru
          _
      $region60: #{tpu_custom_call.1} parent=5 // pred_fallthru
        _
    $region6: #{tpu_custom_call.1} parent=1 // loop_footer
      %s20 = sadd.s32 1, %s16
    $region7: #{tpu_custom_call.1} parent=1 // loop_footer_branch
      %15 = sbr.rel target = $region3
    $region8: #{tpu_custom_call.1} parent=1 // loop_exit
      _
    %1300 = vsyncpa [#allocation3], 1
    %s1301 = scalar_lea.sflag [#allocation3], 1
    %1302 = vsyncpa %s1301, 1
    %1303 = vsyncpa [#allocation5], 1

</llo_original>
